<compile_context>
chip_gen: v7x
topology: tpu7x:2x2x1
jax: 0.10.0
libtpu: 0.0.40
codegen_flags: <defaults>
</compile_context>

<pallas_src>
import math
import jax
import jax.numpy as jnp
from jax.experimental import pallas as pl
from jax.experimental.pallas import tpu as pltpu


def _round_up(x, m):
    return ((x + m - 1) // m) * m


def _vmem_capacity_bytes():
    try:
        return int(pltpu.get_tpu_info().vmem_capacity_bytes)
    except Exception:
        # Conservative fallback = v7x per-TensorCore VMEM.
        return 64 * 1024 * 1024


# ----------------------------- kernels --------------------------------------


def fc_kernel_single(x_ref, w_ref, b_ref, o_ref):
    """Whole problem resident in VMEM: no grid phases, no accumulator scratch."""
    acc = jnp.dot(x_ref[...], w_ref[...], preferred_element_type=jnp.float32)
    o_ref[...] = jnp.maximum(acc + b_ref[...], 0.0).astype(o_ref.dtype)


def fc_kernel_tiled(x_ref, w_ref, b_ref, o_ref, acc_ref):
    """K-reduction tiled GEMM with f32 VMEM accumulator and fused bias+ReLU."""
    k = pl.program_id(2)

    @pl.when(k == 0)
    def _():
        acc_ref[...] = jnp.zeros_like(acc_ref)

    # bf16 operands (pre-cast in wrapper) hit the fast MXU path; f32 accumulate.
    acc_ref[...] += jnp.dot(x_ref[...], w_ref[...],
                            preferred_element_type=jnp.float32)

    @pl.when(k == pl.num_programs(2) - 1)
    def _():
        y = acc_ref[...] + b_ref[...]          # f32 epilogue (bias broadcast)
        o_ref[...] = jnp.maximum(y, 0.0).astype(o_ref.dtype)


# ----------------------------- wrapper ---------------------------------------


def fc_forward(x, w, b, *, tm=512, tn=1024, tk=1024):
    """y = relu(x @ w + b); x:(B,K), w:(K,N), b:(1,N)."""
    B, K = x.shape
    Kw, N = w.shape
    assert K == Kw and b.shape == (1, N)

    out_dtype = x.dtype
    out_itemsize = jnp.dtype(out_dtype).itemsize

    # Pre-cast operands to bf16 in the wrapper (review item #1); bias stays f32
    # so the epilogue add is done at full precision.
    xc = x.astype(jnp.bfloat16)
    wc = w.astype(jnp.bfloat16)
    bc = b.astype(jnp.float32)

    vmem_cap = _vmem_capacity_bytes()

    # ---------------- single-block fast path (small problems) ----------------
    Mp1 = _round_up(B, 16)     # bf16 sublane tile is (16, 128)
    Kp1 = _round_up(K, 128)
    Np1 = _round_up(N, 128)
    single_footprint = (Mp1 * Kp1 * 2 + Kp1 * Np1 * 2 + Np1 * 4
                        + Mp1 * Np1 * (4 + out_itemsize))
    if single_footprint <= 10 * 1024 * 1024:
        xp = jnp.zeros((Mp1, Kp1), jnp.bfloat16).at[:B, :K].set(xc)
        wp = jnp.zeros((Kp1, Np1), jnp.bfloat16).at[:K, :N].set(wc)
        bp = jnp.zeros((1, Np1), jnp.float32).at[:, :N].set(bc)

        cost = pl.CostEstimate(
            flops=2 * Mp1 * Np1 * Kp1,
            transcendentals=0,
            bytes_accessed=(Mp1 * Kp1 * 2 + Kp1 * Np1 * 2 + Np1 * 4
                            + Mp1 * Np1 * out_itemsize),
        )
        out = pl.pallas_call(
            fc_kernel_single,
            out_shape=jax.ShapeDtypeStruct((Mp1, Np1), out_dtype),
            grid=(1,),
            in_specs=[
                pl.BlockSpec((Mp1, Kp1), lambda i: (0, 0)),
                pl.BlockSpec((Kp1, Np1), lambda i: (0, 0)),
                pl.BlockSpec((1, Np1), lambda i: (0, 0)),
            ],
            out_specs=pl.BlockSpec((Mp1, Np1), lambda i: (0, 0)),
            compiler_params=pltpu.CompilerParams(
                dimension_semantics=("arbitrary",),
                vmem_limit_bytes=int(min(vmem_cap - 16 * 1024 * 1024,
                                         64 * 1024 * 1024)),
            ),
            cost_estimate=cost,
        )(xp, wp, bp)
        return out[:B, :N]

    # ------------------------- general tiled path ----------------------------
    # Clamp tiles to the (aligned) problem size; bf16 batch tile multiple of 16,
    # lane dims multiples of 128 (tn defaults keep a multiple of 256 for the
    # v6e/v7x 256x256 MXU).
    tm = min(tm, _round_up(B, 16))
    tn = min(tn, _round_up(N, 128))
    tk = min(tk, _round_up(K, 128))

    Mp, Np, Kp = _round_up(B, tm), _round_up(N, tn), _round_up(K, tk)

    # v7x megacore: make sure the parallel (i, j) grid has >= 2 tiles when K is
    # still tiled, so the second TensorCore is not idle.
    if (Mp // tm) * (Np // tn) == 1 and (Kp // tk) > 1:
        if Np >= 256:
            tn = _round_up(Np // 2, 128)
            Np = _round_up(N, tn)
        elif Mp >= 32:
            tm = _round_up(Mp // 2, 16)
            Mp = _round_up(B, tm)

    # Zero-pad ragged shapes (keeps kernel on unmasked, lane-dense stores).
    xp = (xc if (Mp, Kp) == (B, K)
          else jnp.zeros((Mp, Kp), jnp.bfloat16).at[:B, :K].set(xc))
    wp = (wc if (Kp, Np) == (K, N)
          else jnp.zeros((Kp, Np), jnp.bfloat16).at[:K, :N].set(wc))
    bp = bc if Np == N else jnp.zeros((1, Np), jnp.float32).at[:, :N].set(bc)

    grid = (Mp // tm, Np // tn, Kp // tk)

    # VMEM budget from the actual tile footprint, with headroom under physical
    # VMEM (=> <=48 MiB on v7x, up to ~100 MiB on v5e/v6e).
    tile_bytes = (2 * (tm * tk + tk * tn) * 2      # bf16 inputs, double-buffered
                  + 2 * tn * 4                     # bias row, double-buffered
                  + 2 * tm * tn * out_itemsize     # output tile, double-buffered
                  + tm * tn * 4)                   # f32 accumulator scratch
    vmem_limit = int(min(max(int(tile_bytes * 1.5), 32 * 1024 * 1024),
                         vmem_cap - 16 * 1024 * 1024,
                         100 * 1024 * 1024))

    # Accurate advisory traffic: x re-read N/tn times, W re-read M/tm times.
    cost = pl.CostEstimate(
        flops=2 * Mp * Np * Kp,
        transcendentals=0,
        bytes_accessed=(Mp * Kp * 2 * (Np // tn)
                        + Kp * Np * 2 * (Mp // tm)
                        + Np * 4
                        + Mp * Np * out_itemsize),
    )

    out = pl.pallas_call(
        fc_kernel_tiled,
        out_shape=jax.ShapeDtypeStruct((Mp, Np), out_dtype),
        grid=grid,
        in_specs=[
            pl.BlockSpec((tm, tk), lambda i, j, k: (i, k)),   # x tile (bf16)
            pl.BlockSpec((tk, tn), lambda i, j, k: (k, j)),   # W tile (bf16)
            pl.BlockSpec((1, tn), lambda i, j, k: (0, j)),    # bias row (f32)
        ],
        out_specs=pl.BlockSpec((tm, tn), lambda i, j, k: (i, j)),
        scratch_shapes=[pltpu.VMEM((tm, tn), jnp.float32)],
        compiler_params=pltpu.CompilerParams(
            dimension_semantics=("parallel", "parallel", "arbitrary"),
            vmem_limit_bytes=vmem_limit,
        ),
        cost_estimate=cost,
    )(xp, wp, bp)

    return out[:B, :N]


if __name__ == "__main__":
    # Small shapes consistent with the module: (batch, in_size) -> (batch, hidden)
    batch, in_size, hidden_size = 8, 32, 128
    dropout = 0.2  # identity at inference

    key = jax.random.PRNGKey(0)
    kx, kw, kb = jax.random.split(key, 3)

    # Deterministic parameter init mimicking nn.Linear default:
    # U(-1/sqrt(in_size), 1/sqrt(in_size))
    bound = 1.0 / math.sqrt(in_size)
    w = jax.random.uniform(kw, (in_size, hidden_size), jnp.float32,
                           minval=-bound, maxval=bound)
    b = jax.random.uniform(kb, (1, hidden_size), jnp.float32,
                           minval=-bound, maxval=bound)

    x = jax.random.normal(kx, (batch, in_size), jnp.float32)

    y = fc_forward(x, w, b)
    y = jax.block_until_ready(y)

    # Reference check in plain JAX (f32). Tolerance loosened for bf16 operands
    # with f32 accumulation inside the kernel.
    y_ref = jnp.maximum(x @ w + b, 0.0)
    assert y.shape == (batch, hidden_size)
    assert jnp.allclose(y, y_ref, atol=2e-2, rtol=2e-2)

    print("KERNEL_OK")
</pallas_src>

<mosaic_0001>
module attributes {stable_mosaic.version = 11 : i64} {
  func.func @fc_kernel_single(%arg0: i32, %arg1: memref<16x128xbf16, #tpu.memory_space<vmem>>, %arg2: memref<128x128xbf16, #tpu.memory_space<vmem>>, %arg3: memref<1x128xf32, #tpu.memory_space<vmem>>, %arg4: memref<16x128xf32, #tpu.memory_space<vmem>>) attributes {dimension_semantics = [#tpu.dimension_semantics<arbitrary>], iteration_bounds = array<i64: 1>, scalar_prefetch = 0 : i64, scratch_operands = 0 : i64, tpu.core_type = #tpu.core_type<tc>, window_params = [{pipeline_mode = #tpu.pipeline_mode<synchronous>, transform_indices = @transform_0, window_bounds = array<i64: 16, 128>}, {pipeline_mode = #tpu.pipeline_mode<synchronous>, transform_indices = @transform_1, window_bounds = array<i64: 128, 128>}, {pipeline_mode = #tpu.pipeline_mode<synchronous>, transform_indices = @transform_2, window_bounds = array<i64: 1, 128>}, {pipeline_mode = #tpu.pipeline_mode<synchronous>, transform_indices = @transform_3, window_bounds = array<i64: 16, 128>}]} {
    %c0 = arith.constant 0 : index
    %c0_0 = arith.constant 0 : index
    %0 = vector.load %arg1[%c0, %c0_0] : memref<16x128xbf16, #tpu.memory_space<vmem>>, vector<16x128xbf16>
    %c0_1 = arith.constant 0 : index
    %c0_2 = arith.constant 0 : index
    %1 = vector.load %arg2[%c0_1, %c0_2] : memref<128x128xbf16, #tpu.memory_space<vmem>>, vector<128x128xbf16>
    %cst = arith.constant dense<0.000000e+00> : vector<16x128xf32>
    %2 = tpu.matmul %0, %1, %cst {dimension_numbers = #tpu.dot_dimension_numbers<[1], [0], [0], [1], [0, 0, 1, 1], [], []>} : vector<16x128xbf16>, vector<128x128xbf16>, vector<16x128xf32> -> vector<16x128xf32>
    %c0_3 = arith.constant 0 : index
    %c0_4 = arith.constant 0 : index
    %3 = vector.load %arg3[%c0_3, %c0_4] : memref<1x128xf32, #tpu.memory_space<vmem>>, vector<1x128xf32>
    %4 = vector.broadcast %3 : vector<1x128xf32> to vector<16x128xf32>
    %5 = arith.addf %2, %4 : vector<16x128xf32>
    %cst_5 = arith.constant 0.000000e+00 : f32
    %6 = vector.broadcast %cst_5 : f32 to vector<16x128xf32>
    %7 = arith.maximumf %5, %6 : vector<16x128xf32>
    %c0_6 = arith.constant 0 : index
    %c0_7 = arith.constant 0 : index
    %8 = vector.load %arg4[%c0_6, %c0_7] : memref<16x128xf32, #tpu.memory_space<vmem>>, vector<16x128xf32>
    tpu.vector_store %arg4[%c0_6, %c0_7], %7 {strides = array<i32>} : memref<16x128xf32, #tpu.memory_space<vmem>>, vector<16x128xf32>,
    return
  }
  func.func @transform_0(%arg0: i32) -> (i32, i32) {
    %c0_i32 = arith.constant 0 : i32
    %c0_i32_0 = arith.constant 0 : i32
    %c0_i32_1 = arith.constant 0 : i32
    return %c0_i32, %c0_i32_0 : i32, i32
  }
  func.func @transform_1(%arg0: i32) -> (i32, i32) {
    %c0_i32 = arith.constant 0 : i32
    %c0_i32_0 = arith.constant 0 : i32
    %c0_i32_1 = arith.constant 0 : i32
    return %c0_i32, %c0_i32_0 : i32, i32
  }
  func.func @transform_2(%arg0: i32) -> (i32, i32) {
    %c0_i32 = arith.constant 0 : i32
    %c0_i32_0 = arith.constant 0 : i32
    %c0_i32_1 = arith.constant 0 : i32
    return %c0_i32, %c0_i32_0 : i32, i32
  }
  func.func @transform_3(%arg0: i32) -> (i32, i32) {
    %c0_i32 = arith.constant 0 : i32
    %c0_i32_0 = arith.constant 0 : i32
    %c0_i32_1 = arith.constant 0 : i32
    return %c0_i32, %c0_i32_0 : i32, i32
  }
}

</mosaic_0001>

<llo_original>
// kernel: tpu_custom_call.1
$region0: #{tpu_custom_call.1}
  #allocation0 [shape = 'u32[]', space=smem, size = 0x4, offset = 0x4, fixed_abs, tag = 'smem constant byte address 0x4 - core index']
  #allocation1 [shape = 'u32[144,128]{1,0:T(1,128)}', space=vmem, size = 0x12000, scoped, tag = 'internal scratch']
  %s0 = inlined_call_operand.hbm [shape: bf16[16,128], index: 0, kind: input, shape index: {}]
  %s1 = inlined_call_operand.hbm [shape: bf16[128,128], index: 1, kind: input, shape index: {}]
  %s2 = inlined_call_operand.vmem [shape: f32[1,128], index: 2, kind: input, shape index: {}]
  %s3 = inlined_call_operand.hbm [shape: f32[16,128], index: 3, kind: output, shape index: {}]
  %s4 = sld [smem:[#allocation0]]
  $region30: #{tpu_custom_call.1} parent=0
    _
  %s6 = ssub.s32 1, %s4
  %s7 = scalar_select 0, %s6, %s4
  $region1: #{tpu_custom_call.1} parent=0
    #allocation2 [shape = 'u8[4096]{0}', space=vmem, size = 0x1000, scoped, tag = 'input window, operand 0, single buffered']
    #allocation3 [shape = 's32[1]{0}', space=sflag, size = 0x4, scoped, tag = 'scoped memory for tpu_custom_call.1']
    #allocation4 [shape = 's32[1]{0}', space=sflag, size = 0x4, scoped, tag = 'scoped memory for tpu_custom_call.1']
    #allocation5 [shape = 'u8[32768]{0}', space=vmem, size = 0x8000, scoped, tag = 'input window, operand 1, single buffered']
    #allocation6 [shape = 's32[1]{0}', space=sflag, size = 0x4, scoped, tag = 'scoped memory for tpu_custom_call.1']
    #allocation7 [shape = 'u8[8192]{0}', space=vmem, size = 0x2000, scoped, tag = 'output window, operand 0, single buffered']
    %8 = vsyncpa [#allocation3], 0
    %9 = vsyncpa [#allocation6], 0
    %10 = vsyncpa [#allocation4], 0
    // Predicated region
    $region2: #{tpu_custom_call.1} parent=1 // pred_check
      _
    $region3: #{tpu_custom_call.1} parent=1 // pred_check_branch
      %12 = sbr.rel (0) target = $region5
    $region4: #{tpu_custom_call.1} parent=1 // pred_region
      %s14 = ssub.s32 128, 128
      %15 = vsyncadd [#allocation3], %s14
      %s16 = sshll.u32 [#allocation2], 4
      %s17 = int_to_ptr.vmem [resolvable:$true] %s16
      %22 = dma.hbm_to_vmem [thread:$0]  %s0, 128, %s17, [#allocation3], 64, 64, 4
    $region5: #{tpu_custom_call.1} parent=1 // pred_fallthru
      _
    // Predicated region
    $region6: #{tpu_custom_call.1} parent=1 // pred_check
      _
    $region7: #{tpu_custom_call.1} parent=1 // pred_check_branch
      %24 = sbr.rel (0) target = $region9
    $region8: #{tpu_custom_call.1} parent=1 // pred_region
      %s26 = ssub.s32 1024, 1024
      %27 = vsyncadd [#allocation6], %s26
      %s28 = sshll.u32 [#allocation5], 4
      %s29 = int_to_ptr.vmem [resolvable:$true] %s28
      %34 = dma.hbm_to_vmem [thread:$0]  %s1, 1024, %s29, [#allocation6], 64, 64, 4
    $region9: #{tpu_custom_call.1} parent=1 // pred_fallthru
      _
    // Predicated region
    $region10: #{tpu_custom_call.1} parent=1 // pred_check
      _
    $region11: #{tpu_custom_call.1} parent=1 // pred_check_branch
      %36 = sbr.rel (0) target = $region13
    $region12: #{tpu_custom_call.1} parent=1 // pred_region
      _
    $region13: #{tpu_custom_call.1} parent=1 // pred_fallthru
      _
    // Predicated region
    $region14: #{tpu_custom_call.1} parent=1 // pred_check
      _
    $region15: #{tpu_custom_call.1} parent=1 // pred_check_branch
      %38 = sbr.rel (0) target = $region17
    $region16: #{tpu_custom_call.1} parent=1 // pred_region
      %39 = dma.done [#allocation3], 128
    $region17: #{tpu_custom_call.1} parent=1 // pred_fallthru
      _
    // Predicated region
    $region18: #{tpu_custom_call.1} parent=1 // pred_check
      _
    $region19: #{tpu_custom_call.1} parent=1 // pred_check_branch
      %41 = sbr.rel (0) target = $region21
    $region20: #{tpu_custom_call.1} parent=1 // pred_region
      %42 = dma.done [#allocation6], 1024
    $region21: #{tpu_custom_call.1} parent=1 // pred_fallthru
      _
    %v44 = vld [vmem:[#allocation2] sm:$0xf]
    %v45 = vld [vmem:[#allocation2 + $0x4] sm:$0xf]
    %v46 = vld [vmem:[#allocation5] sm:$0xf]
    %v47 = vld [vmem:[#allocation5 + $0x4] sm:$0xf]
    %v48 = vld [vmem:[#allocation5 + $0x8] sm:$0xf]
    %v49 = vld [vmem:[#allocation5 + $0xc] sm:$0xf]
    %v50 = vld [vmem:[#allocation5 + $0x10] sm:$0xf]
    %v51 = vld [vmem:[#allocation5 + $0x14] sm:$0xf]
    %v52 = vld [vmem:[#allocation5 + $0x18] sm:$0xf]
    %v53 = vld [vmem:[#allocation5 + $0x1c] sm:$0xf]
    %v54 = vld [vmem:[#allocation5 + $0x20] sm:$0xf]
    %v55 = vld [vmem:[#allocation5 + $0x24] sm:$0xf]
    %v56 = vld [vmem:[#allocation5 + $0x28] sm:$0xf]
    %v57 = vld [vmem:[#allocation5 + $0x2c] sm:$0xf]
    %v58 = vld [vmem:[#allocation5 + $0x30] sm:$0xf]
    %v59 = vld [vmem:[#allocation5 + $0x34] sm:$0xf]
    %v60 = vld [vmem:[#allocation5 + $0x38] sm:$0xf]
    %v61 = vld [vmem:[#allocation5 + $0x3c] sm:$0xf]
    %v62 = vld [vmem:[%s2] sm:$0x1]
    %v64 = vlaneseq
    %v65 = vshrl.u32 %v64, 7
    %v66 = vsub.s32 0, %v65
    %v67 = vrot.slane %v62, %v66
    %v71 = vunpack.c.l.b16 %v44
    %v72 = vunpack.c.l.b16 %v45
    %v73 = vpack.c.b16 %v72, %v71
    %v91 = vunpack.c.l.b16 %v46
    %v92 = vunpack.c.l.b16 %v47
    %v93 = vunpack.c.l.b16 %v48
    %v94 = vunpack.c.l.b16 %v49
    %v95 = vunpack.c.l.b16 %v50
    %v96 = vunpack.c.l.b16 %v51
    %v97 = vunpack.c.l.b16 %v52
    %v98 = vunpack.c.l.b16 %v53
    %v99 = vunpack.c.l.b16 %v54
    %v100 = vunpack.c.l.b16 %v55
    %v101 = vunpack.c.l.b16 %v56
    %v102 = vunpack.c.l.b16 %v57
    %v103 = vunpack.c.l.b16 %v58
    %v104 = vunpack.c.l.b16 %v59
    %v105 = vunpack.c.l.b16 %v60
    %v106 = vunpack.c.l.b16 %v61
    %v107 = vpack.c.b16 %v92, %v91
    %v108 = vpack.c.b16 %v94, %v93
    %v109 = vpack.c.b16 %v96, %v95
    %v110 = vpack.c.b16 %v98, %v97
    %v111 = vpack.c.b16 %v100, %v99
    %v112 = vpack.c.b16 %v102, %v101
    %v113 = vpack.c.b16 %v104, %v103
    %v114 = vpack.c.b16 %v106, %v105
    %123 = vmatprep.subr.bf16.mxu0 0
    %124 = vmatpush1.bf16.msra.mxu0 %v107
    %125 = vmatprep.subr.bf16.mxu0 0
    %126 = vmatpush1.bf16.msra.mxu0 %v108
    %127 = vmatprep.subr.bf16.mxu0 0
    %128 = vmatpush1.bf16.msra.mxu0 %v109
    %129 = vmatprep.subr.bf16.mxu0 0
    %130 = vmatpush1.bf16.msra.mxu0 %v110
    %131 = vmatprep.subr.bf16.mxu0 0
    %132 = vmatpush1.bf16.msra.mxu0 %v111
    %133 = vmatprep.subr.bf16.mxu0 0
    %134 = vmatpush1.bf16.msra.mxu0 %v112
    %135 = vmatprep.subr.bf16.mxu0 0
    %136 = vmatpush1.bf16.msra.mxu0 %v113
    %137 = vmatprep.subr.bf16.mxu0 0
    %138 = vmatpush1.bf16.msra.mxu0 %v114
    %139 = vmatprep.subr.bf16.mxu0 0
    %140 = vmatpush1.bf16.msra.mxu0 0
    %141 = vmatprep.subr.bf16.mxu0 0
    %142 = vmatpush1.bf16.msra.mxu0 0
    %143 = vmatprep.subr.bf16.mxu0 0
    %144 = vmatpush1.bf16.msra.mxu0 0
    %145 = vmatprep.subr.bf16.mxu0 0
    %146 = vmatpush1.bf16.msra.mxu0 0
    %147 = vmatprep.subr.bf16.mxu0 0
    %148 = vmatpush1.bf16.msra.mxu0 0
    %149 = vmatprep.subr.bf16.mxu0 0
    %150 = vmatpush1.bf16.msra.mxu0 0
    %151 = vmatprep.subr.bf16.mxu0 0
    %152 = vmatpush1.bf16.msra.mxu0 0
    %153 = vmatprep.subr.bf16.mxu0 0
    %154 = vmatpush1.bf16.msra.mxu0 0
    %155 = vmatprep.mubr.bf16.mxu0 0
    %156 = vmatmul.mubr.bf16.gmra.mrb[0].mxu0 %v73
    %v157 = vpop.f32.mrb[0].mxu0
    %v158 = vadd.f32 %v67, %v157
    %v159 = vpop.f32.mrb[0].mxu0
    %v160 = vpop.f32.mrb[0].mxu0
    %v161 = vadd.f32 %v67, %v160
    %v162 = vpop.f32.mrb[0].mxu0
    %163 = vdwg.mxu0
    %v164 = vmax.f32 %v158, 0.0
    %v165 = vmax.f32 %v161, 0.0
    %166 = vst [vmem:[#allocation7] sm:$0xff] %v164
    %167 = vst [vmem:[#allocation7 + $0x8] sm:$0xff] %v165
    // Predicated region
    $region22: #{tpu_custom_call.1} parent=1 // pred_check
      _
    $region23: #{tpu_custom_call.1} parent=1 // pred_check_branch
      %169 = sbr.rel (0) target = $region25
    $region24: #{tpu_custom_call.1} parent=1 // pred_region
      %s171 = ssub.s32 256, 256
      %172 = vsyncadd [#allocation4], %s171
      %s173 = sshll.u32 [#allocation7], 4
      %s174 = int_to_ptr.vmem [resolvable:$true] %s173
      %179 = dma.vmem_to_hbm [thread:$0]  %s174, 256, %s3, [#allocation4], 128, 128, 8
    $region25: #{tpu_custom_call.1} parent=1 // pred_fallthru
      _
    // Predicated region
    $region26: #{tpu_custom_call.1} parent=1 // pred_check
      _
    $region27: #{tpu_custom_call.1} parent=1 // pred_check_branch
      %181 = sbr.rel (0) target = $region29
    $region28: #{tpu_custom_call.1} parent=1 // pred_region
      %182 = dma.done [#allocation4], 256
    $region29: #{tpu_custom_call.1} parent=1 // pred_fallthru
      _
    %183 = vsyncpa [#allocation3], 1
    %184 = vsyncpa [#allocation6], 1
    %185 = vsyncpa [#allocation4], 1

</llo_original>
